<compile_context>
chip_gen: v7x
topology: tpu7x:2x2x1
jax: 0.10.0
libtpu: 0.0.40
codegen_flags: <defaults>
</compile_context>

<pallas_src>
import functools

import jax
import jax.numpy as jnp
from jax.experimental import pallas as pl
from jax.experimental.pallas import tpu as pltpu


def _outconv_vpu_kernel(w_ref, b_ref, x_ref, o_ref, *, c_in):
    """Tiny-channel path: full-block outer-product accumulation on the VPU.

    w_ref: VMEM (C_out, C_in)   resident weight
    b_ref: VMEM (C_out, 1)      resident bias (f32)
    x_ref: VMEM (BN, C_in, T)   lane-dense spatial tile
    o_ref: VMEM (BN, C_out, T)
    """
    w = w_ref[...].astype(jnp.float32)                       # (C_out, C_in)
    b = b_ref[...]                                            # (C_out, 1) f32
    x = x_ref[...].astype(jnp.float32)                        # (BN, C_in, T)
    # acc[(BN, C_out, T)] += w[:, ci] (outer) x[:, ci, :] -- one full-block FMA
    # per input channel, instead of C_out separate (1, T) row accumulators.
    acc = w[None, :, 0:1] * x[:, 0:1, :]
    for ci in range(1, c_in):                                 # unrolled: c_in tiny here
        acc = acc + w[None, :, ci:ci + 1] * x[:, ci:ci + 1, :]
    o_ref[...] = (acc + b[None, :, :]).astype(o_ref.dtype)


def _outconv_mxu_kernel(w_ref, b_ref, x_ref, o_ref):
    """General path: per-batch (C_out, C_in) @ (C_in, T) on the MXU, f32 accumulate.

    w_ref: VMEM (C_out, C_in)   resident weight
    b_ref: VMEM (C_out, 1)      resident bias (f32)
    x_ref: VMEM (BN, C_in, T)
    o_ref: VMEM (BN, C_out, T)
    """
    w = w_ref[...]
    b = b_ref[...]
    for n in range(x_ref.shape[0]):                           # BN is capped small (<= 8) here
        acc = jnp.dot(w, x_ref[n], preferred_element_type=jnp.float32)
        o_ref[n] = (acc + b).astype(o_ref.dtype)


def _largest_divisor_at_most(n, cap):
    """Largest divisor of n that is <= cap (always >= 1)."""
    cap = max(1, min(n, cap))
    for d in range(cap, 0, -1):
        if n % d == 0:
            return d
    return 1


@functools.partial(jax.jit, static_argnames=("max_tile_hw",))
def outconv_forward(x_nchw, weight, bias, *, max_tile_hw=32768):
    """1x1 conv forward.

    x_nchw : (N, C_in, H, W)
    weight : (C_out, C_in, 1, 1)   (PyTorch Conv2d weight layout)
    bias   : (C_out,)
    returns: (N, C_out, H, W)
    """
    N, C_in, H, W = x_nchw.shape
    C_out = weight.shape[0]
    HW = H * W

    x_dtype = x_nchw.dtype
    itemsize = jnp.dtype(x_dtype).itemsize
    # Keep multiply precision consistent across both paths (f32 accumulate in-kernel).
    w2 = weight.reshape(C_out, C_in).astype(x_dtype)
    b2 = bias.reshape(C_out, 1).astype(jnp.float32)

    small_channels = (C_in * C_out) <= 64

    # ---- VMEM budget ------------------------------------------------------
    w_bytes = int(w2.size) * jnp.dtype(w2.dtype).itemsize + int(b2.size) * 4
    # ~20 MiB of double-buffered x/out tiles, minus the (conservatively
    # double-buffered) resident weight slab.  Sized against v7x (64 MiB phys,
    # 32 MiB scoped default); comfortable on v5e/v6e once vmem_limit_bytes is
    # raised explicitly below.
    io_budget = max(4 << 20, (20 << 20) - 2 * w_bytes)
    target_step_bytes = 2 << 20            # ~2 MiB of HBM traffic per grid step

    # ---- spatial tile: multiple of 128, divisor of round_up(HW, 128) -------
    hw128_blocks = (HW + 127) // 128       # 128-lane blocks
    per_lane_bytes = (C_in + C_out) * itemsize
    cap_lanes = max(128, min(max_tile_hw, io_budget // (2 * per_lane_bytes)))
    tile_blocks = _largest_divisor_at_most(hw128_blocks, cap_lanes // 128)
    tile_hw = tile_blocks * 128
    num_hw_tiles = -(-hw128_blocks // tile_blocks)

    # ---- batch blocking: raise per-step bytes toward the target ------------
    per_batch_step_bytes = per_lane_bytes * tile_hw
    bn_cap = min(
        max(1, io_budget // (2 * per_batch_step_bytes)),
        max(1, target_step_bytes // per_batch_step_bytes),
        N,
    )
    if not small_channels:
        bn_cap = min(bn_cap, 8)            # MXU kernel unrolls over the batch block
    bn = _largest_divisor_at_most(N, bn_cap)

    # Keep >= 2 grid steps so megacore (v7x: 2 TensorCores) can shard the grid.
    while bn > 1 and (N // bn) * num_hw_tiles < 2:
        bn = _largest_divisor_at_most(N, bn - 1)
    if (N // bn) * num_hw_tiles < 2 and hw128_blocks > 1:
        tile_blocks = -(-hw128_blocks // 2)            # ~half split (<=128 wasted lanes)
        tile_hw = tile_blocks * 128
        num_hw_tiles = -(-hw128_blocks // tile_blocks)

    grid = (N // bn, num_hw_tiles)

    # ---- specs --------------------------------------------------------------
    x3 = x_nchw.reshape(N, C_in, HW)       # free reshape: NCHW is (N, C, HW)-contiguous
    x_spec = pl.BlockSpec((bn, C_in, tile_hw), lambda b, s: (b, 0, s))
    o_spec = pl.BlockSpec((bn, C_out, tile_hw), lambda b, s: (b, 0, s))
    # Resident weight/bias: constant index_map -> same VMEM block reused every step.
    w_spec = pl.BlockSpec((C_out, C_in), lambda b, s: (0, 0))
    b_spec = pl.BlockSpec((C_out, 1), lambda b, s: (0, 0))

    if small_channels:
        kernel = functools.partial(_outconv_vpu_kernel, c_in=C_in)
    else:
        kernel = _outconv_mxu_kernel

    step_io_bytes = 2 * bn * per_batch_step_bytes      # double-buffered in + out tiles
    vmem_limit = int(min(48 << 20,
                         max(16 << 20, step_io_bytes + 2 * w_bytes + (4 << 20))))

    cost = pl.CostEstimate(
        flops=2 * N * C_out * C_in * HW,
        transcendentals=0,
        bytes_accessed=int(N * (C_in + C_out) * HW * itemsize + w_bytes),
    )

    out3 = pl.pallas_call(
        kernel,
        out_shape=jax.ShapeDtypeStruct((N, C_out, HW), x_dtype),
        grid_spec=pltpu.PrefetchScalarGridSpec(
            num_scalar_prefetch=0,
            grid=grid,
            in_specs=[w_spec, b_spec, x_spec],
            out_specs=o_spec,
        ),
        compiler_params=pltpu.CompilerParams(
            dimension_semantics=("parallel", "parallel"),
            vmem_limit_bytes=vmem_limit,
        ),
        cost_estimate=cost,
    )(w2, b2, x3)

    return out3.reshape(N, C_out, H, W)


if __name__ == "__main__":
    key = jax.random.PRNGKey(0)
    kx, kw, kb, kx2, kw2, kb2 = jax.random.split(key, 6)

    # ---- small-channel (VPU outer-product) path: the module's typical use ----
    N, C_in, H, W = 2, 4, 16, 16
    C_out = 3
    x = jax.random.normal(kx, (N, C_in, H, W), dtype=jnp.float32)
    weight = jax.random.normal(kw, (C_out, C_in, 1, 1), dtype=jnp.float32) * 0.1
    bias = jax.random.normal(kb, (C_out,), dtype=jnp.float32) * 0.1

    out = jax.block_until_ready(outconv_forward(x, weight, bias))
    ref = jnp.einsum("nihw,oi->nohw", x, weight.reshape(C_out, C_in)) \
        + bias[None, :, None, None]
    assert out.shape == (N, C_out, H, W)
    assert jnp.allclose(out, ref, atol=1e-5, rtol=1e-5), "VPU-path mismatch vs reference"

    # ---- larger-channel (MXU) path smoke test --------------------------------
    N2, C_in2, C_out2, H2, W2 = 2, 64, 48, 16, 16
    x2 = jax.random.normal(kx2, (N2, C_in2, H2, W2), dtype=jnp.float32)
    weight2 = jax.random.normal(kw2, (C_out2, C_in2, 1, 1), dtype=jnp.float32) * 0.1
    bias2 = jax.random.normal(kb2, (C_out2,), dtype=jnp.float32) * 0.1

    out2 = jax.block_until_ready(outconv_forward(x2, weight2, bias2))
    ref2 = jnp.einsum("nihw,oi->nohw", x2, weight2.reshape(C_out2, C_in2)) \
        + bias2[None, :, None, None]
    assert out2.shape == (N2, C_out2, H2, W2)
    # Default-precision f32 matmuls may use bf16 MXU passes -> looser tolerance.
    assert jnp.allclose(out2, ref2, atol=3e-2, rtol=3e-2), "MXU-path mismatch vs reference"

    print("KERNEL_OK")
</pallas_src>

<mosaic_0001>
module attributes {stable_mosaic.version = 11 : i64} {
  func.func @_outconv_vpu_kernel(%arg0: i32, %arg1: i32, %arg2: memref<3x4xf32, #tpu.memory_space<vmem>>, %arg3: memref<3x1xf32, #tpu.memory_space<vmem>>, %arg4: memref<1x4x256xf32, #tpu.memory_space<vmem>>, %arg5: memref<1x3x256xf32, #tpu.memory_space<vmem>>) attributes {dimension_semantics = [#tpu.dimension_semantics<parallel>, #tpu.dimension_semantics<parallel>], iteration_bounds = array<i64: 2, 1>, scalar_prefetch = 0 : i64, scratch_operands = 0 : i64, tpu.core_type = #tpu.core_type<tc>, window_params = [{pipeline_mode = #tpu.pipeline_mode<synchronous>, transform_indices = @transform_0, window_bounds = array<i64: 3, 4>}, {pipeline_mode = #tpu.pipeline_mode<synchronous>, transform_indices = @transform_1, window_bounds = array<i64: 3, 1>}, {transform_indices = @transform_2, window_bounds = array<i64: 1, 4, 256>}, {transform_indices = @transform_3, window_bounds = array<i64: 1, 3, 256>}]} {
    %c0 = arith.constant 0 : index
    %c0_0 = arith.constant 0 : index
    %0 = vector.load %arg2[%c0, %c0_0] : memref<3x4xf32, #tpu.memory_space<vmem>>, vector<3x4xf32>
    %c0_1 = arith.constant 0 : index
    %c0_2 = arith.constant 0 : index
    %1 = vector.load %arg3[%c0_1, %c0_2] : memref<3x1xf32, #tpu.memory_space<vmem>>, vector<3x1xf32>
    %c0_3 = arith.constant 0 : index
    %c0_4 = arith.constant 0 : index
    %c0_5 = arith.constant 0 : index
    %2 = vector.load %arg4[%c0_3, %c0_4, %c0_5] : memref<1x4x256xf32, #tpu.memory_space<vmem>>, vector<1x4x256xf32>
    %3 = vector.extract_strided_slice %0 {offsets = [0, 0], sizes = [3, 1], strides = [1, 1]} : vector<3x4xf32> to vector<3x1xf32>
    %4 = vector.shape_cast %3 : vector<3x1xf32> to vector<1x3x1xf32>
    %5 = vector.extract_strided_slice %2 {offsets = [0, 0, 0], sizes = [1, 1, 256], strides = [1, 1, 1]} : vector<1x4x256xf32> to vector<1x1x256xf32>
    %6 = vector.broadcast %4 : vector<1x3x1xf32> to vector<1x3x256xf32>
    %7 = vector.broadcast %5 : vector<1x1x256xf32> to vector<1x3x256xf32>
    %8 = arith.mulf %6, %7 : vector<1x3x256xf32>
    %9 = vector.extract_strided_slice %0 {offsets = [0, 1], sizes = [3, 1], strides = [1, 1]} : vector<3x4xf32> to vector<3x1xf32>
    %10 = vector.shape_cast %9 : vector<3x1xf32> to vector<1x3x1xf32>
    %11 = vector.extract_strided_slice %2 {offsets = [0, 1, 0], sizes = [1, 1, 256], strides = [1, 1, 1]} : vector<1x4x256xf32> to vector<1x1x256xf32>
    %12 = vector.broadcast %10 : vector<1x3x1xf32> to vector<1x3x256xf32>
    %13 = vector.broadcast %11 : vector<1x1x256xf32> to vector<1x3x256xf32>
    %14 = arith.mulf %12, %13 : vector<1x3x256xf32>
    %15 = arith.addf %8, %14 : vector<1x3x256xf32>
    %16 = vector.extract_strided_slice %0 {offsets = [0, 2], sizes = [3, 1], strides = [1, 1]} : vector<3x4xf32> to vector<3x1xf32>
    %17 = vector.shape_cast %16 : vector<3x1xf32> to vector<1x3x1xf32>
    %18 = vector.extract_strided_slice %2 {offsets = [0, 2, 0], sizes = [1, 1, 256], strides = [1, 1, 1]} : vector<1x4x256xf32> to vector<1x1x256xf32>
    %19 = vector.broadcast %17 : vector<1x3x1xf32> to vector<1x3x256xf32>
    %20 = vector.broadcast %18 : vector<1x1x256xf32> to vector<1x3x256xf32>
    %21 = arith.mulf %19, %20 : vector<1x3x256xf32>
    %22 = arith.addf %15, %21 : vector<1x3x256xf32>
    %23 = vector.extract_strided_slice %0 {offsets = [0, 3], sizes = [3, 1], strides = [1, 1]} : vector<3x4xf32> to vector<3x1xf32>
    %24 = vector.shape_cast %23 : vector<3x1xf32> to vector<1x3x1xf32>
    %25 = vector.extract_strided_slice %2 {offsets = [0, 3, 0], sizes = [1, 1, 256], strides = [1, 1, 1]} : vector<1x4x256xf32> to vector<1x1x256xf32>
    %26 = vector.broadcast %24 : vector<1x3x1xf32> to vector<1x3x256xf32>
    %27 = vector.broadcast %25 : vector<1x1x256xf32> to vector<1x3x256xf32>
    %28 = arith.mulf %26, %27 : vector<1x3x256xf32>
    %29 = arith.addf %22, %28 : vector<1x3x256xf32>
    %30 = vector.shape_cast %1 : vector<3x1xf32> to vector<1x3x1xf32>
    %31 = vector.broadcast %30 : vector<1x3x1xf32> to vector<1x3x256xf32>
    %32 = arith.addf %29, %31 : vector<1x3x256xf32>
    %c0_6 = arith.constant 0 : index
    %c0_7 = arith.constant 0 : index
    %c0_8 = arith.constant 0 : index
    %33 = vector.load %arg5[%c0_6, %c0_7, %c0_8] : memref<1x3x256xf32, #tpu.memory_space<vmem>>, vector<1x3x256xf32>
    tpu.vector_store %arg5[%c0_6, %c0_7, %c0_8], %32 {strides = array<i32>} : memref<1x3x256xf32, #tpu.memory_space<vmem>>, vector<1x3x256xf32>,
    return
  }
  func.func @transform_0(%arg0: i32, %arg1: i32) -> (i32, i32) {
    %c0_i32 = arith.constant 0 : i32
    %c0_i32_0 = arith.constant 0 : i32
    %c0_i32_1 = arith.constant 0 : i32
    return %c0_i32, %c0_i32_0 : i32, i32
  }
  func.func @transform_1(%arg0: i32, %arg1: i32) -> (i32, i32) {
    %c0_i32 = arith.constant 0 : i32
    %c0_i32_0 = arith.constant 0 : i32
    %c0_i32_1 = arith.constant 0 : i32
    return %c0_i32, %c0_i32_0 : i32, i32
  }
  func.func @transform_2(%arg0: i32, %arg1: i32) -> (i32, i32, i32) {
    %c0_i32 = arith.constant 0 : i32
    %c0_i32_0 = arith.constant 0 : i32
    return %arg0, %c0_i32, %arg1 : i32, i32, i32
  }
  func.func @transform_3(%arg0: i32, %arg1: i32) -> (i32, i32, i32) {
    %c0_i32 = arith.constant 0 : i32
    %c0_i32_0 = arith.constant 0 : i32
    return %arg0, %c0_i32, %arg1 : i32, i32, i32
  }
}

</mosaic_0001>

<llo_original>
// kernel: outconv_forward.1
$region0: #{outconv_forward.1}
  #allocation0 [shape = 'u32[]', space=smem, size = 0x4, offset = 0x4, fixed_abs, tag = 'smem constant byte address 0x4 - core index']
  #allocation1 [shape = 'u32[144,128]{1,0:T(1,128)}', space=vmem, size = 0x12000, scoped, tag = 'internal scratch']
  %s0 = inlined_call_operand.vmem [shape: f32[3,4], index: 0, kind: input, shape index: {}]
  %s1 = inlined_call_operand.vmem [shape: f32[3,1], index: 1, kind: input, shape index: {}]
  %s2 = inlined_call_operand.vmem [shape: f32[2,4,256], index: 2, kind: input, shape index: {}]
  %s3 = inlined_call_operand.vmem [shape: f32[2,3,256], index: 3, kind: output, shape index: {}]
  %s4 = sld [smem:[#allocation0]]
  $region45: #{outconv_forward.1} parent=0
    _
  %s6 = ssub.s32 1, %s4
  %s7 = scalar_select 0, %s6, %s4
  loop: start=0, step=1, limit=4
  $region2: #{outconv_forward.1} parent=0 // loop_pre_header
    _
  $region3: #{outconv_forward.1} parent=0 // loop_header
    %s9 = sphi 0, %s13
    %p10 = scmp.ge.s32.totalorder %s9, 4
    %s16 = sphi 0, %s28
    %s17 = sphi 0, %s24
    %s18 = sphi 0, %s16
    %s19 = sphi 0, %s17
    %s20 = sphi 0, %s18
    %s21 = sphi 0, %s19
    %s29 = sphi 0, %s29
    %s31 = sphi 0, %s29
    %s32 = sphi 0, %s31
    %s46 = sphi 0, %s32
    %s50 = sphi 0, %s50
    %s52 = sphi 0, %s50
    %s53 = sphi 0, %s52
    %s67 = sphi 0, %s53
    %s75 = sphi 0, %s77
    %s78 = sphi 0, %s75
    %s79 = sphi 0, %s78
    %s95 = sphi 0, %s79
    %s103 = sphi 0, %s105
    %s106 = sphi 0, %s103
    %s107 = sphi 0, %s106
    %s123 = sphi 0, %s107
  $region4: #{outconv_forward.1} parent=0 // loop_header_branch
    %12 = sbr.rel (%p10) target = $region8
  $region5: #{outconv_forward.1} parent=0 // loop_body
    %s14 = ssub.s32 %s9, 1
    %s15 = ssub.s32 %s9, 2
    %s22 = sadd.s32 1, %s17
    %p23 = scmp.ge.s32.totalorder %s22, 1
    %s24 = scalar_select %p23, 0, %s22
    %s25 = sadd.s32 1, %s16
    %s26 = scalar_select %p23, %s25, %s16
    %p27 = scmp.ge.s32.totalorder %s26, 2
    %s28 = scalar_select %p27, 0, %s26
    %s30 = sadd.s32 %s29, 1
    %p33 = scmp.eq.s32.totalorder %s9, 1
    %p34 = scmp.ne.s32.totalorder %s29, %s31
    %p35 = scmp.eq.s32.totalorder %s9, 0
    %p36 = por %p34, %p35
    %p37 = scmp.ne.s32.totalorder %s29, %s31
    %p38 = scmp.eq.s32.totalorder %s14, 1
    %p39 = por %p37, %p38
    %p40 = scmp.ne.s32.totalorder %s31, %s32
    %p41 = scmp.eq.s32.totalorder %s14, 0
    %p42 = por %p40, %p41
    %p43 = scmp.ne.s32.totalorder %s31, %s32
    %p44 = scmp.eq.s32.totalorder %s15, 1
    %p45 = por %p43, %p44
    %p47 = scmp.ne.s32.totalorder %s32, %s46
    %p48 = scmp.eq.s32.totalorder %s15, 0
    %p49 = por %p47, %p48
    %s51 = sadd.s32 %s50, 1
    %p54 = scmp.eq.s32.totalorder %s9, 1
    %p55 = scmp.ne.s32.totalorder %s50, %s52
    %p56 = scmp.eq.s32.totalorder %s9, 0
    %p57 = por %p55, %p56
    %p58 = scmp.ne.s32.totalorder %s50, %s52
    %p59 = scmp.eq.s32.totalorder %s14, 1
    %p60 = por %p58, %p59
    %p61 = scmp.ne.s32.totalorder %s52, %s53
    %p62 = scmp.eq.s32.totalorder %s14, 0
    %p63 = por %p61, %p62
    %p64 = scmp.ne.s32.totalorder %s52, %s53
    %p65 = scmp.eq.s32.totalorder %s15, 1
    %p66 = por %p64, %p65
    %p68 = scmp.ne.s32.totalorder %s53, %s67
    %p69 = scmp.eq.s32.totalorder %s15, 0
    %p70 = por %p68, %p69
    %s71 = ssub.s32 %s16, %s28
    %s72 = ssub.s32 %s17, %s24
    %s73 = sor.u32 %s71, %s72
    %p74 = scmp.eq.s32.totalorder %s73, 0
    %s76 = sadd.s32 %s75, 1
    %s77 = scalar_select %p74, %s75, %s76
    %p80 = pneg %p74
    %p81 = scmp.eq.s32.totalorder %s9, 1
    %p82 = por %p80, %p81
    %p83 = scmp.ne.s32.totalorder %s75, %s78
    %p84 = scmp.eq.s32.totalorder %s9, 0
    %p85 = por %p83, %p84
    %p86 = scmp.ne.s32.totalorder %s75, %s78
    %p87 = scmp.eq.s32.totalorder %s14, 1
    %p88 = por %p86, %p87
    %p89 = scmp.ne.s32.totalorder %s78, %s79
    %p90 = scmp.eq.s32.totalorder %s14, 0
    %p91 = por %p89, %p90
    %p92 = scmp.ne.s32.totalorder %s78, %s79
    %p93 = scmp.eq.s32.totalorder %s15, 1
    %p94 = por %p92, %p93
    %p96 = scmp.ne.s32.totalorder %s79, %s95
    %p97 = scmp.eq.s32.totalorder %s15, 0
    %p98 = por %p96, %p97
    %s99 = ssub.s32 %s16, %s28
    %s100 = ssub.s32 %s17, %s24
    %s101 = sor.u32 %s99, %s100
    %p102 = scmp.eq.s32.totalorder %s101, 0
    %s104 = sadd.s32 %s103, 1
    %s105 = scalar_select %p102, %s103, %s104
    %p108 = pneg %p102
    %p109 = scmp.eq.s32.totalorder %s9, 1
    %p110 = por %p108, %p109
    %p111 = scmp.ne.s32.totalorder %s103, %s106
    %p112 = scmp.eq.s32.totalorder %s9, 0
    %p113 = por %p111, %p112
    %p114 = scmp.ne.s32.totalorder %s103, %s106
    %p115 = scmp.eq.s32.totalorder %s14, 1
    %p116 = por %p114, %p115
    %p117 = scmp.ne.s32.totalorder %s106, %s107
    %p118 = scmp.eq.s32.totalorder %s14, 0
    %p119 = por %p117, %p118
    %p120 = scmp.ne.s32.totalorder %s106, %s107
    %p121 = scmp.eq.s32.totalorder %s15, 1
    %p122 = por %p120, %p121
    %p124 = scmp.ne.s32.totalorder %s107, %s123
    %p125 = scmp.eq.s32.totalorder %s15, 0
    %p126 = por %p124, %p125
    %p127 = scmp.le.s32.totalorder 1, %s9
    %p128 = scmp.lt.s32.totalorder %s9, 3
    %p129 = pnand %p127, %p128
    %p130 = pneg %p129
    // Predicated region
    $region9: #{outconv_forward.1} parent=5 // pred_check
      _
    $region10: #{outconv_forward.1} parent=5 // pred_check_branch
      %132 = sbr.rel (%p129) target = $region12
    $region11: #{outconv_forward.1} parent=5 // pred_region
      %s133 = ssub.s32 %s9, 1
      // Predicated region
      $region13: #{outconv_forward.1} parent=11 // pred_check
        %p134 = pneg %p42
      $region14: #{outconv_forward.1} parent=11 // pred_check_branch
        %136 = sbr.rel (%p134) target = $region16
      $region15: #{outconv_forward.1} parent=11 // pred_region
        _
      $region16: #{outconv_forward.1} parent=11 // pred_fallthru
        _
      // Predicated region
      $region17: #{outconv_forward.1} parent=11 // pred_check
        %p137 = pneg %p63
      $region18: #{outconv_forward.1} parent=11 // pred_check_branch
        %139 = sbr.rel (%p137) target = $region20
      $region19: #{outconv_forward.1} parent=11 // pred_region
        _
      $region20: #{outconv_forward.1} parent=11 // pred_fallthru
        _
    $region12: #{outconv_forward.1} parent=5 // pred_fallthru
      _
    %p140 = scmp.lt.s32.totalorder %s9, 2
    // Predicated region
    $region21: #{outconv_forward.1} parent=5 // pred_check
      %p141 = pneg %p140
    $region22: #{outconv_forward.1} parent=5 // pred_check_branch
      %143 = sbr.rel (%p141) target = $region24
    $region23: #{outconv_forward.1} parent=5 // pred_region
      // Predicated region
      $region25: #{outconv_forward.1} parent=23 // pred_check
        %p144 = pneg %p85
      $region26: #{outconv_forward.1} parent=23 // pred_check_branch
        %146 = sbr.rel (%p144) target = $region28
      $region27: #{outconv_forward.1} parent=23 // pred_region
        %s147 = smul.u32 2, %s17
        %p148 = scmp.lt.s32.totalorder %s16, 1
        %s149 = scalar_select %p148, %s16, 1
        %p150 = scmp.lt.s32.totalorder %s147, 1
        %s151 = scalar_select %p150, %s147, 1
        %s152 = smul.addr %s149, 2
        %s153 = sadd.s32 %s151, %s152
        %s154 = smul.addr %s153, 4
        %s155 = scalar_lea.vmem %s2, %s154
        %s156 = smul.u32 2, %s17
      $region28: #{outconv_forward.1} parent=23 // pred_fallthru
        _
    $region24: #{outconv_forward.1} parent=5 // pred_fallthru
      _
    %p157 = scmp.le.s32.totalorder 1, %s9
    %p158 = scmp.lt.s32.totalorder %s9, 3
    %p159 = pnand %p157, %p158
    %p160 = pneg %p159
    // Predicated region
    $region29: #{outconv_forward.1} parent=5 // pred_check
      _
    $region30: #{outconv_forward.1} parent=5 // pred_check_branch
      %162 = sbr.rel (%p159) target = $region32
    $region31: #{outconv_forward.1} parent=5 // pred_region
      %s163 = ssub.s32 %s9, 1
      %p164 = pneg %p42
      %p165 = pneg %p39
      %p166 = pneg %p63
      %p167 = pneg %p60
      %s168 = smul.u32 2, %s19
      %p169 = scmp.lt.s32.totalorder %s18, 1
      %s170 = scalar_select %p169, %s18, 1
      %p171 = scmp.lt.s32.totalorder %s168, 1
      %s172 = scalar_select %p171, %s168, 1
      %s173 = smul.addr %s170, 2
      %s174 = sadd.s32 %s172, %s173
      %s175 = smul.addr %s174, 4
      %s176 = scalar_lea.vmem %s2, %s175
      %p177 = pneg %p91
      %p178 = pneg %p88
      %p179 = pneg %p119
      %p180 = pneg %p116
      %s181 = smul.u32 2, %s19
      %p182 = scmp.lt.s32.totalorder %s18, 1
      %s183 = scalar_select %p182, %s18, 1
      %p184 = scmp.lt.s32.totalorder %s181, 1
      %s185 = scalar_select %p184, %s181, 1
      %s186 = smul.addr %s183, 2
      %s187 = sadd.s32 %s185, %s186
      %s188 = smul.addr %s187, 4
      %s189 = scalar_lea.vmem %s3, %s188
      %s190 = smul.u32 2, %s19
      %p191 = scmp.lt.s32.totalorder %s18, 1
      %s192 = scalar_select %p191, %s18, 1
      %p193 = scmp.lt.s32.totalorder %s190, 1
      %s194 = scalar_select %p193, %s190, 1
      %s195 = smul.addr %s192, 2
      %s196 = sadd.s32 %s194, %s195
      %s197 = smul.addr %s196, 4
      %s198 = scalar_lea.vmem %s2, %s197
      %s199 = smul.u32 2, %s19
      %s200 = smul.u32 2, %s19
      %p201 = scmp.lt.s32.totalorder %s18, 1
      %s202 = scalar_select %p201, %s18, 1
      %p203 = scmp.lt.s32.totalorder %s200, 1
      %s204 = scalar_select %p203, %s200, 1
      %s205 = smul.addr %s202, 2
      %s206 = sadd.s32 %s204, %s205
      %s207 = smul.addr %s206, 4
      %s208 = scalar_lea.vmem %s3, %s207
      %s209 = smul.u32 2, %s19
      %v210 = vld [vmem:[%s0] sm:$0x7]
      %v211 = vld [vmem:[%s1] sm:$0x7]
      %v212 = vld [vmem:[%s198] sm:$0xff]
      %214 = vset.pattern.permute.xlu0 0
      %215 = vperm.xlu0 %214, %v210
      %v216 = vpop.permute.xlu0 %215
      %v219 = vlaneseq
      %v220 = vshrl.u32 %v219, 7
      %v221 = vsub.s32 0, %v220
      %v222 = vrot.slane %v212, %v221
      %v223 = vlaneseq
      %v224 = vshrl.u32 %v223, 7
      %v225 = vsub.s32 4, %v224
      %v226 = vrot.slane %v212, %v225
      %v229 = vlaneseq
      %v230 = vshrl.u32 %v229, 7
      %v231 = vsub.s32 0, %v230
      %v232 = vrot.slane %v222, %v231
      %v233 = vlaneseq
      %v234 = vshrl.u32 %v233, 7
      %v235 = vsub.s32 0, %v234
      %v236 = vrot.slane %v226, %v235
      %v237 = vmul.f32 %v216, %v232
      %v238 = vmul.f32 %v216, %v236
      %239 = vset.pattern.permute.xlu0 1
      %240 = vperm.xlu0 %239, %v210
      %v241 = vpop.permute.xlu0 %240
      %v243 = vlaneseq
      %v244 = vshrl.u32 %v243, 7
      %v245 = vsub.s32 1, %v244
      %v246 = vrot.slane %v212, %v245
      %v247 = vlaneseq
      %v248 = vshrl.u32 %v247, 7
      %v249 = vsub.s32 5, %v248
      %v250 = vrot.slane %v212, %v249
      %v253 = vlaneseq
      %v254 = vshrl.u32 %v253, 7
      %v255 = vsub.s32 1, %v254
      %v256 = vrot.slane %v246, %v255
      %v257 = vlaneseq
      %v258 = vshrl.u32 %v257, 7
      %v259 = vsub.s32 1, %v258
      %v260 = vrot.slane %v250, %v259
      %v261 = vmul.f32 %v241, %v256
      %v262 = vmul.f32 %v241, %v260
      %v263 = vadd.f32 %v237, %v261
      %v264 = vadd.f32 %v238, %v262
      %265 = vset.pattern.permute.xlu0 2
      %266 = vperm.xlu0 %265, %v210
      %v267 = vpop.permute.xlu0 %266
      %v269 = vlaneseq
      %v270 = vshrl.u32 %v269, 7
      %v271 = vsub.s32 2, %v270
      %v272 = vrot.slane %v212, %v271
      %v273 = vlaneseq
      %v274 = vshrl.u32 %v273, 7
      %v275 = vsub.s32 6, %v274
      %v276 = vrot.slane %v212, %v275
      %v279 = vlaneseq
      %v280 = vshrl.u32 %v279, 7
      %v281 = vsub.s32 2, %v280
      %v282 = vrot.slane %v272, %v281
      %v283 = vlaneseq
      %v284 = vshrl.u32 %v283, 7
      %v285 = vsub.s32 2, %v284
      %v286 = vrot.slane %v276, %v285
      %v287 = vmul.f32 %v267, %v282
      %v288 = vmul.f32 %v267, %v286
      %v289 = vadd.f32 %v263, %v287
      %v290 = vadd.f32 %v264, %v288
      %291 = vset.pattern.permute.xlu0 3
      %292 = vperm.xlu0 %291, %v210
      %v293 = vpop.permute.xlu0 %292
      %v295 = vlaneseq
      %v296 = vshrl.u32 %v295, 7
      %v297 = vsub.s32 3, %v296
      %v298 = vrot.slane %v212, %v297
      %v299 = vlaneseq
      %v300 = vshrl.u32 %v299, 7
      %v301 = vsub.s32 7, %v300
      %v302 = vrot.slane %v212, %v301
      %v305 = vlaneseq
      %v306 = vshrl.u32 %v305, 7
      %v307 = vsub.s32 3, %v306
      %v308 = vrot.slane %v298, %v307
      %v309 = vlaneseq
      %v310 = vshrl.u32 %v309, 7
      %v311 = vsub.s32 3, %v310
      %v312 = vrot.slane %v302, %v311
      %v313 = vmul.f32 %v293, %v308
      %v314 = vmul.f32 %v293, %v312
      %v315 = vadd.f32 %v289, %v313
      %v316 = vadd.f32 %v290, %v314
      %318 = vset.pattern.permute.xlu0 0
      %319 = vperm.xlu0 %318, %v211
      %v320 = vpop.permute.xlu0 %319
      %v322 = vadd.f32 %v315, %v320
      %v323 = vadd.f32 %v316, %v320
      %v326 = vcombine.low %v322, %v323
      %328 = vst [vmem:[%s208] sm:$0x77] %v326
      %s329 = smul.u32 2, %s19
      %p330 = scmp.lt.s32.totalorder %s18, 1
      %s331 = scalar_select %p330, %s18, 1
      %p332 = scmp.lt.s32.totalorder %s329, 1
      %s333 = scalar_select %p332, %s329, 1
      %s334 = smul.addr %s331, 2
      %s335 = sadd.s32 %s333, %s334
      %s336 = smul.addr %s335, 4
      %s337 = scalar_lea.vmem %s3, %s336
      // Predicated region
      $region33: #{outconv_forward.1} parent=31 // pred_check
        %p338 = pneg %p116
      $region34: #{outconv_forward.1} parent=31 // pred_check_branch
        %340 = sbr.rel (%p338) target = $region36
      $region35: #{outconv_forward.1} parent=31 // pred_region
        %s341 = smul.u32 2, %s19
      $region36: #{outconv_forward.1} parent=31 // pred_fallthru
        _
    $region32: #{outconv_forward.1} parent=5 // pred_fallthru
      _
    %p342 = scmp.le.s32.totalorder 2, %s9
    // Predicated region
    $region37: #{outconv_forward.1} parent=5 // pred_check
      %p343 = pneg %p342
    $region38: #{outconv_forward.1} parent=5 // pred_check_branch
      %345 = sbr.rel (%p343) target = $region40
    $region39: #{outconv_forward.1} parent=5 // pred_region
      %s346 = ssub.s32 %s9, 2
      // Predicated region
      $region41: #{outconv_forward.1} parent=39 // pred_check
        %p347 = pneg %p122
      $region42: #{outconv_forward.1} parent=39 // pred_check_branch
        %349 = sbr.rel (%p347) target = $region44
      $region43: #{outconv_forward.1} parent=39 // pred_region
        %s350 = smul.u32 2, %s21
        %p351 = scmp.lt.s32.totalorder %s20, 1
        %s352 = scalar_select %p351, %s20, 1
        %p353 = scmp.lt.s32.totalorder %s350, 1
        %s354 = scalar_select %p353, %s350, 1
        %s355 = smul.addr %s352, 2
        %s356 = sadd.s32 %s354, %s355
        %s357 = smul.addr %s356, 4
        %s358 = scalar_lea.vmem %s3, %s357
      $region44: #{outconv_forward.1} parent=39 // pred_fallthru
        _
    $region40: #{outconv_forward.1} parent=5 // pred_fallthru
      _
  $region6: #{outconv_forward.1} parent=0 // loop_footer
    %s13 = sadd.s32 1, %s9
  $region7: #{outconv_forward.1} parent=0 // loop_footer_branch
    %8 = sbr.rel target = $region3
  $region8: #{outconv_forward.1} parent=0 // loop_exit
    _

</llo_original>
